<compile_context>
chip_gen: v5e
topology: v5e:2x2
jax: 0.10.0
libtpu: 0.0.40
codegen_flags: <defaults>
</compile_context>

<pallas_src>
import jax
import jax.numpy as jnp
from jax.experimental import pallas as pl
from jax.experimental.pallas import tpu as pltpu


# ---------------------------------------------------------------------------
# Kernel
# ---------------------------------------------------------------------------
def _make_bnn_kernel(num_layers):
    """Kernel over one batch tile: chain of (w = mu + sigma*eps; h = h@w + b; ReLU)."""

    def kernel(*refs):
        o_ref = refs[-1]
        x_ref = refs[0]
        layer_refs = refs[1:-1]  # 4 refs per layer: w_mu, w_sigma, w_eps, b (pre-sampled)

        h = x_ref[...]
        for li in range(num_layers):
            w_mu, w_sigma, w_eps, b = layer_refs[4 * li : 4 * li + 4]
            # Bayes-by-Backprop reparameterization (sigma precomputed in wrapper).
            w = w_mu[...] + w_sigma[...] * w_eps[...]
            h = jnp.dot(h, w, preferred_element_type=jnp.float32) + b[...]
            if li < num_layers - 1:
                h = jnp.maximum(h, 0.0)  # hidden-layer ReLU
        o_ref[...] = h.astype(o_ref.dtype)

    return kernel


# ---------------------------------------------------------------------------
# Wrapper
# ---------------------------------------------------------------------------
def _round_up(n, m):
    return ((n + m - 1) // m) * m


def _pad2d(a, rows, cols):
    r, c = a.shape
    return jnp.pad(a, ((0, rows - r), (0, cols - c)))


def bayesian_network_forward(x, params, *, max_batch_tile=256):
    """x: [B, input_dim] f32; params: list of dicts with w_mu,w_rho,w_eps,b_mu,b_rho,b_eps.

    Weights are stored [in_dim, out_dim] (so the kernel computes x @ W + b,
    equivalent to PyTorch F.linear with W_pt = W.T).
    """
    batch, in_dim = x.shape
    num_layers = len(params)
    dims = [in_dim] + [p["w_mu"].shape[1] for p in params]
    pdims = [_round_up(d, 128) for d in dims]  # lane-dense feature dims

    # Batch tiling: sublane-aligned tile, grid axis marked "parallel".
    bb = min(max_batch_tile, _round_up(batch, 8))
    b_pad = _round_up(batch, bb)

    flat_inputs = [_pad2d(x, b_pad, pdims[0])]
    in_specs = [pl.BlockSpec((bb, pdims[0]), lambda i: (i, 0))]

    w_dtype = jnp.float32
    for li, p in enumerate(params):
        kp, np_ = pdims[li], pdims[li + 1]
        # Hoisted, numerically-stable softplus (EUP work stays out of the kernel).
        w_sigma = jax.nn.softplus(p["w_rho"])
        # Tiny biases: fully pre-sampled host/wrapper-side.
        b = p["b_mu"] + jax.nn.softplus(p["b_rho"]) * p["b_eps"]

        flat_inputs += [
            _pad2d(p["w_mu"].astype(w_dtype), kp, np_),
            _pad2d(w_sigma.astype(w_dtype), kp, np_),
            _pad2d(p["w_eps"].astype(w_dtype), kp, np_),
            _pad2d(b.astype(w_dtype), 1, np_),
        ]
        # Weights/biases broadcast across batch tiles (same block every iteration
        # -> Pallas keeps them resident, no re-DMA per tile).
        in_specs += [
            pl.BlockSpec((kp, np_), lambda i: (0, 0)),
            pl.BlockSpec((kp, np_), lambda i: (0, 0)),
            pl.BlockSpec((kp, np_), lambda i: (0, 0)),
            pl.BlockSpec((1, np_), lambda i: (0, 0)),
        ]

    out_pad = pdims[-1]
    out = pl.pallas_call(
        _make_bnn_kernel(num_layers),
        out_shape=jax.ShapeDtypeStruct((b_pad, out_pad), jnp.float32),
        grid_spec=pltpu.PrefetchScalarGridSpec(
            num_scalar_prefetch=0,
            grid=(b_pad // bb,),
            in_specs=in_specs,
            out_specs=pl.BlockSpec((bb, out_pad), lambda i: (i, 0)),
        ),
        compiler_params=pltpu.CompilerParams(dimension_semantics=("parallel",)),
    )(*flat_inputs)

    return out[:batch, : dims[-1]]


# ---------------------------------------------------------------------------
# Parameter construction + pure-JAX reference
# ---------------------------------------------------------------------------
def make_bayesian_linear_params(key, in_dim, out_dim):
    """Synthetic BayesianLinear layer params: weight_mu ~ N(0,0.1), rho=-5, frozen eps.
    Weights stored [in_dim, out_dim]."""
    k_wmu, k_weps, k_bmu, k_beps = jax.random.split(key, 4)
    return {
        "w_mu": 0.1 * jax.random.normal(k_wmu, (in_dim, out_dim), jnp.float32),
        "w_rho": jnp.full((in_dim, out_dim), -5.0, jnp.float32),
        "w_eps": jax.random.normal(k_weps, (in_dim, out_dim), jnp.float32),
        "b_mu": 0.1 * jax.random.normal(k_bmu, (1, out_dim), jnp.float32),
        "b_rho": jnp.full((1, out_dim), -5.0, jnp.float32),
        "b_eps": jax.random.normal(k_beps, (1, out_dim), jnp.float32),
    }


def reference_forward(x, params):
    """Pure-JAX reference of the same stochastic forward pass."""
    h = x
    for i, p in enumerate(params):
        w = p["w_mu"] + jax.nn.softplus(p["w_rho"]) * p["w_eps"]
        b = p["b_mu"] + jax.nn.softplus(p["b_rho"]) * p["b_eps"]
        h = h @ w + b
        if i < len(params) - 1:
            h = jnp.maximum(h, 0.0)
    return h


if __name__ == "__main__":
    # BayesianNetwork(input_dim=16, output_dim=8, hidden_dims=[64, 32], ReLU)
    input_dim, output_dim = 16, 8
    hidden_dims = [64, 32]
    batch = 8

    key = jax.random.PRNGKey(0)
    k_x, k1, k2, k3 = jax.random.split(key, 4)

    x = jax.random.normal(k_x, (batch, input_dim), jnp.float32)

    dims = [input_dim] + hidden_dims + [output_dim]
    params = [
        make_bayesian_linear_params(k, dims[i], dims[i + 1])
        for i, k in enumerate([k1, k2, k3])
    ]

    out = jax.block_until_ready(bayesian_network_forward(x, params))
    ref = jax.block_until_ready(reference_forward(x, params))

    assert out.shape == (batch, output_dim)
    assert jnp.allclose(out, ref, atol=1e-5, rtol=1e-5), "mismatch vs JAX reference"

    print("KERNEL_OK")
</pallas_src>

<mosaic_0001>
module attributes {stable_mosaic.version = 11 : i64} {
  func.func @kernel(%arg0: i32, %arg1: memref<8x128xf32, #tpu.memory_space<vmem>>, %arg2: memref<128x128xf32, #tpu.memory_space<vmem>>, %arg3: memref<128x128xf32, #tpu.memory_space<vmem>>, %arg4: memref<128x128xf32, #tpu.memory_space<vmem>>, %arg5: memref<1x128xf32, #tpu.memory_space<vmem>>, %arg6: memref<128x128xf32, #tpu.memory_space<vmem>>, %arg7: memref<128x128xf32, #tpu.memory_space<vmem>>, %arg8: memref<128x128xf32, #tpu.memory_space<vmem>>, %arg9: memref<1x128xf32, #tpu.memory_space<vmem>>, %arg10: memref<128x128xf32, #tpu.memory_space<vmem>>, %arg11: memref<128x128xf32, #tpu.memory_space<vmem>>, %arg12: memref<128x128xf32, #tpu.memory_space<vmem>>, %arg13: memref<1x128xf32, #tpu.memory_space<vmem>>, %arg14: memref<8x128xf32, #tpu.memory_space<vmem>>) attributes {dimension_semantics = [#tpu.dimension_semantics<parallel>], iteration_bounds = array<i64: 1>, scalar_prefetch = 0 : i64, scratch_operands = 0 : i64, tpu.core_type = #tpu.core_type<tc>, window_params = [{transform_indices = @transform_0, window_bounds = array<i64: 8, 128>}, {pipeline_mode = #tpu.pipeline_mode<synchronous>, transform_indices = @transform_1, window_bounds = array<i64: 128, 128>}, {pipeline_mode = #tpu.pipeline_mode<synchronous>, transform_indices = @transform_2, window_bounds = array<i64: 128, 128>}, {pipeline_mode = #tpu.pipeline_mode<synchronous>, transform_indices = @transform_3, window_bounds = array<i64: 128, 128>}, {pipeline_mode = #tpu.pipeline_mode<synchronous>, transform_indices = @transform_4, window_bounds = array<i64: 1, 128>}, {pipeline_mode = #tpu.pipeline_mode<synchronous>, transform_indices = @transform_5, window_bounds = array<i64: 128, 128>}, {pipeline_mode = #tpu.pipeline_mode<synchronous>, transform_indices = @transform_6, window_bounds = array<i64: 128, 128>}, {pipeline_mode = #tpu.pipeline_mode<synchronous>, transform_indices = @transform_7, window_bounds = array<i64: 128, 128>}, {pipeline_mode = #tpu.pipeline_mode<synchronous>, transform_indices = @transform_8, window_bounds = array<i64: 1, 128>}, {pipeline_mode = #tpu.pipeline_mode<synchronous>, transform_indices = @transform_9, window_bounds = array<i64: 128, 128>}, {pipeline_mode = #tpu.pipeline_mode<synchronous>, transform_indices = @transform_10, window_bounds = array<i64: 128, 128>}, {pipeline_mode = #tpu.pipeline_mode<synchronous>, transform_indices = @transform_11, window_bounds = array<i64: 128, 128>}, {pipeline_mode = #tpu.pipeline_mode<synchronous>, transform_indices = @transform_12, window_bounds = array<i64: 1, 128>}, {transform_indices = @transform_13, window_bounds = array<i64: 8, 128>}]} {
    %c0 = arith.constant 0 : index
    %c0_0 = arith.constant 0 : index
    %0 = vector.load %arg1[%c0, %c0_0] : memref<8x128xf32, #tpu.memory_space<vmem>>, vector<8x128xf32>
    %c0_1 = arith.constant 0 : index
    %c0_2 = arith.constant 0 : index
    %1 = vector.load %arg2[%c0_1, %c0_2] : memref<128x128xf32, #tpu.memory_space<vmem>>, vector<128x128xf32>
    %c0_3 = arith.constant 0 : index
    %c0_4 = arith.constant 0 : index
    %2 = vector.load %arg3[%c0_3, %c0_4] : memref<128x128xf32, #tpu.memory_space<vmem>>, vector<128x128xf32>
    %c0_5 = arith.constant 0 : index
    %c0_6 = arith.constant 0 : index
    %3 = vector.load %arg4[%c0_5, %c0_6] : memref<128x128xf32, #tpu.memory_space<vmem>>, vector<128x128xf32>
    %4 = arith.mulf %2, %3 : vector<128x128xf32>
    %5 = arith.addf %1, %4 : vector<128x128xf32>
    %cst = arith.constant dense<0.000000e+00> : vector<8x128xf32>
    %6 = tpu.matmul %0, %5, %cst {dimension_numbers = #tpu.dot_dimension_numbers<[1], [0], [0], [1], [0, 0, 1, 1], [], []>} : vector<8x128xf32>, vector<128x128xf32>, vector<8x128xf32> -> vector<8x128xf32>
    %c0_7 = arith.constant 0 : index
    %c0_8 = arith.constant 0 : index
    %7 = vector.load %arg5[%c0_7, %c0_8] : memref<1x128xf32, #tpu.memory_space<vmem>>, vector<1x128xf32>
    %8 = vector.broadcast %7 : vector<1x128xf32> to vector<8x128xf32>
    %9 = arith.addf %6, %8 : vector<8x128xf32>
    %cst_9 = arith.constant 0.000000e+00 : f32
    %10 = vector.broadcast %cst_9 : f32 to vector<8x128xf32>
    %11 = arith.maximumf %9, %10 : vector<8x128xf32>
    %c0_10 = arith.constant 0 : index
    %c0_11 = arith.constant 0 : index
    %12 = vector.load %arg6[%c0_10, %c0_11] : memref<128x128xf32, #tpu.memory_space<vmem>>, vector<128x128xf32>
    %c0_12 = arith.constant 0 : index
    %c0_13 = arith.constant 0 : index
    %13 = vector.load %arg7[%c0_12, %c0_13] : memref<128x128xf32, #tpu.memory_space<vmem>>, vector<128x128xf32>
    %c0_14 = arith.constant 0 : index
    %c0_15 = arith.constant 0 : index
    %14 = vector.load %arg8[%c0_14, %c0_15] : memref<128x128xf32, #tpu.memory_space<vmem>>, vector<128x128xf32>
    %15 = arith.mulf %13, %14 : vector<128x128xf32>
    %16 = arith.addf %12, %15 : vector<128x128xf32>
    %cst_16 = arith.constant dense<0.000000e+00> : vector<8x128xf32>
    %17 = tpu.matmul %11, %16, %cst_16 {dimension_numbers = #tpu.dot_dimension_numbers<[1], [0], [0], [1], [0, 0, 1, 1], [], []>} : vector<8x128xf32>, vector<128x128xf32>, vector<8x128xf32> -> vector<8x128xf32>
    %c0_17 = arith.constant 0 : index
    %c0_18 = arith.constant 0 : index
    %18 = vector.load %arg9[%c0_17, %c0_18] : memref<1x128xf32, #tpu.memory_space<vmem>>, vector<1x128xf32>
    %19 = vector.broadcast %18 : vector<1x128xf32> to vector<8x128xf32>
    %20 = arith.addf %17, %19 : vector<8x128xf32>
    %cst_19 = arith.constant 0.000000e+00 : f32
    %21 = vector.broadcast %cst_19 : f32 to vector<8x128xf32>
    %22 = arith.maximumf %20, %21 : vector<8x128xf32>
    %c0_20 = arith.constant 0 : index
    %c0_21 = arith.constant 0 : index
    %23 = vector.load %arg10[%c0_20, %c0_21] : memref<128x128xf32, #tpu.memory_space<vmem>>, vector<128x128xf32>
    %c0_22 = arith.constant 0 : index
    %c0_23 = arith.constant 0 : index
    %24 = vector.load %arg11[%c0_22, %c0_23] : memref<128x128xf32, #tpu.memory_space<vmem>>, vector<128x128xf32>
    %c0_24 = arith.constant 0 : index
    %c0_25 = arith.constant 0 : index
    %25 = vector.load %arg12[%c0_24, %c0_25] : memref<128x128xf32, #tpu.memory_space<vmem>>, vector<128x128xf32>
    %26 = arith.mulf %24, %25 : vector<128x128xf32>
    %27 = arith.addf %23, %26 : vector<128x128xf32>
    %cst_26 = arith.constant dense<0.000000e+00> : vector<8x128xf32>
    %28 = tpu.matmul %22, %27, %cst_26 {dimension_numbers = #tpu.dot_dimension_numbers<[1], [0], [0], [1], [0, 0, 1, 1], [], []>} : vector<8x128xf32>, vector<128x128xf32>, vector<8x128xf32> -> vector<8x128xf32>
    %c0_27 = arith.constant 0 : index
    %c0_28 = arith.constant 0 : index
    %29 = vector.load %arg13[%c0_27, %c0_28] : memref<1x128xf32, #tpu.memory_space<vmem>>, vector<1x128xf32>
    %30 = vector.broadcast %29 : vector<1x128xf32> to vector<8x128xf32>
    %31 = arith.addf %28, %30 : vector<8x128xf32>
    %c0_29 = arith.constant 0 : index
    %c0_30 = arith.constant 0 : index
    %32 = vector.load %arg14[%c0_29, %c0_30] : memref<8x128xf32, #tpu.memory_space<vmem>>, vector<8x128xf32>
    tpu.vector_store %arg14[%c0_29, %c0_30], %31 {strides = array<i32>} : memref<8x128xf32, #tpu.memory_space<vmem>>, vector<8x128xf32>,
    return
  }
  func.func @transform_0(%arg0: i32) -> (i32, i32) {
    %c0_i32 = arith.constant 0 : i32
    %c0_i32_0 = arith.constant 0 : i32
    return %arg0, %c0_i32 : i32, i32
  }
  func.func @transform_1(%arg0: i32) -> (i32, i32) {
    %c0_i32 = arith.constant 0 : i32
    %c0_i32_0 = arith.constant 0 : i32
    %c0_i32_1 = arith.constant 0 : i32
    return %c0_i32, %c0_i32_0 : i32, i32
  }
  func.func @transform_2(%arg0: i32) -> (i32, i32) {
    %c0_i32 = arith.constant 0 : i32
    %c0_i32_0 = arith.constant 0 : i32
    %c0_i32_1 = arith.constant 0 : i32
    return %c0_i32, %c0_i32_0 : i32, i32
  }
  func.func @transform_3(%arg0: i32) -> (i32, i32) {
    %c0_i32 = arith.constant 0 : i32
    %c0_i32_0 = arith.constant 0 : i32
    %c0_i32_1 = arith.constant 0 : i32
    return %c0_i32, %c0_i32_0 : i32, i32
  }
  func.func @transform_4(%arg0: i32) -> (i32, i32) {
    %c0_i32 = arith.constant 0 : i32
    %c0_i32_0 = arith.constant 0 : i32
    %c0_i32_1 = arith.constant 0 : i32
    return %c0_i32, %c0_i32_0 : i32, i32
  }
  func.func @transform_5(%arg0: i32) -> (i32, i32) {
    %c0_i32 = arith.constant 0 : i32
    %c0_i32_0 = arith.constant 0 : i32
    %c0_i32_1 = arith.constant 0 : i32
    return %c0_i32, %c0_i32_0 : i32, i32
  }
  func.func @transform_6(%arg0: i32) -> (i32, i32) {
    %c0_i32 = arith.constant 0 : i32
    %c0_i32_0 = arith.constant 0 : i32
    %c0_i32_1 = arith.constant 0 : i32
    return %c0_i32, %c0_i32_0 : i32, i32
  }
  func.func @transform_7(%arg0: i32) -> (i32, i32) {
    %c0_i32 = arith.constant 0 : i32
    %c0_i32_0 = arith.constant 0 : i32
    %c0_i32_1 = arith.constant 0 : i32
    return %c0_i32, %c0_i32_0 : i32, i32
  }
  func.func @transform_8(%arg0: i32) -> (i32, i32) {
    %c0_i32 = arith.constant 0 : i32
    %c0_i32_0 = arith.constant 0 : i32
    %c0_i32_1 = arith.constant 0 : i32
    return %c0_i32, %c0_i32_0 : i32, i32
  }
  func.func @transform_9(%arg0: i32) -> (i32, i32) {
    %c0_i32 = arith.constant 0 : i32
    %c0_i32_0 = arith.constant 0 : i32
    %c0_i32_1 = arith.constant 0 : i32
    return %c0_i32, %c0_i32_0 : i32, i32
  }
  func.func @transform_10(%arg0: i32) -> (i32, i32) {
    %c0_i32 = arith.constant 0 : i32
    %c0_i32_0 = arith.constant 0 : i32
    %c0_i32_1 = arith.constant 0 : i32
    return %c0_i32, %c0_i32_0 : i32, i32
  }
  func.func @transform_11(%arg0: i32) -> (i32, i32) {
    %c0_i32 = arith.constant 0 : i32
    %c0_i32_0 = arith.constant 0 : i32
    %c0_i32_1 = arith.constant 0 : i32
    return %c0_i32, %c0_i32_0 : i32, i32
  }
  func.func @transform_12(%arg0: i32) -> (i32, i32) {
    %c0_i32 = arith.constant 0 : i32
    %c0_i32_0 = arith.constant 0 : i32
    %c0_i32_1 = arith.constant 0 : i32
    return %c0_i32, %c0_i32_0 : i32, i32
  }
  func.func @transform_13(%arg0: i32) -> (i32, i32) {
    %c0_i32 = arith.constant 0 : i32
    %c0_i32_0 = arith.constant 0 : i32
    return %arg0, %c0_i32 : i32, i32
  }
}

</mosaic_0001>

<llo_original>
// kernel: tpu_custom_call.1
$region0: #{tpu_custom_call.1}
  #allocation0 [shape = 'u32[]', space=smem, size = 0x4, offset = 0x4, fixed_abs, tag = 'smem constant byte address 0x4 - core index']
  #allocation1 [shape = 'u32[72,128]{1,0:T(1,128)}', space=vmem, size = 0x9000, scoped, tag = 'internal scratch']
  %s0 = inlined_call_operand.hbm [shape: f32[8,128], index: 0, kind: input, shape index: {}]
  %s1 = inlined_call_operand.hbm [shape: f32[128,128], index: 1, kind: input, shape index: {}]
  %s2 = inlined_call_operand.hbm [shape: f32[128,128], index: 2, kind: input, shape index: {}]
  %s3 = inlined_call_operand.hbm [shape: f32[128,128], index: 3, kind: input, shape index: {}]
  %s4 = inlined_call_operand.vmem [shape: f32[1,128], index: 4, kind: input, shape index: {}]
  %s5 = inlined_call_operand.hbm [shape: f32[128,128], index: 5, kind: input, shape index: {}]
  %s6 = inlined_call_operand.hbm [shape: f32[128,128], index: 6, kind: input, shape index: {}]
  %s7 = inlined_call_operand.hbm [shape: f32[128,128], index: 7, kind: input, shape index: {}]
  %s8 = inlined_call_operand.vmem [shape: f32[1,128], index: 8, kind: input, shape index: {}]
  %s9 = inlined_call_operand.hbm [shape: f32[128,128], index: 9, kind: input, shape index: {}]
  %s10 = inlined_call_operand.hbm [shape: f32[128,128], index: 10, kind: input, shape index: {}]
  %s11 = inlined_call_operand.hbm [shape: f32[128,128], index: 11, kind: input, shape index: {}]
  %s12 = inlined_call_operand.vmem [shape: f32[1,128], index: 12, kind: input, shape index: {}]
  %s13 = inlined_call_operand.hbm [shape: f32[8,128], index: 13, kind: output, shape index: {}]
  %s14 = sld [smem:[#allocation0]]
  $region102: #{tpu_custom_call.1} parent=0
    _
  %s16 = ssub.s32 1, %s14
  %s17 = scalar_select 0, %s16, %s14
  $region1: #{tpu_custom_call.1} parent=0
    #allocation2 [shape = 'u8[4096]{0}', space=vmem, size = 0x1000, scoped, tag = 'input window, operand 0, single buffered']
    #allocation3 [shape = 's32[1]{0}', space=sflag, size = 0x4, scoped, tag = 'scoped memory for tpu_custom_call.1']
    #allocation4 [shape = 's32[1]{0}', space=sflag, size = 0x4, scoped, tag = 'scoped memory for tpu_custom_call.1']
    #allocation5 [shape = 'u8[65536]{0}', space=vmem, size = 0x10000, scoped, tag = 'input window, operand 1, single buffered']
    #allocation6 [shape = 's32[1]{0}', space=sflag, size = 0x4, scoped, tag = 'scoped memory for tpu_custom_call.1']
    #allocation7 [shape = 'u8[65536]{0}', space=vmem, size = 0x10000, scoped, tag = 'input window, operand 2, single buffered']
    #allocation8 [shape = 'u8[65536]{0}', space=vmem, size = 0x10000, scoped, tag = 'input window, operand 3, single buffered']
    #allocation9 [shape = 's32[1]{0}', space=sflag, size = 0x4, scoped, tag = 'scoped memory for tpu_custom_call.1']
    #allocation10 [shape = 'u8[65536]{0}', space=vmem, size = 0x10000, scoped, tag = 'input window, operand 5, single buffered']
    #allocation11 [shape = 'u8[65536]{0}', space=vmem, size = 0x10000, scoped, tag = 'input window, operand 6, single buffered']
    #allocation12 [shape = 's32[1]{0}', space=sflag, size = 0x4, scoped, tag = 'scoped memory for tpu_custom_call.1']
    #allocation13 [shape = 'u8[65536]{0}', space=vmem, size = 0x10000, scoped, tag = 'input window, operand 7, single buffered']
    #allocation14 [shape = 'u8[65536]{0}', space=vmem, size = 0x10000, scoped, tag = 'input window, operand 9, single buffered']
    #allocation15 [shape = 's32[1]{0}', space=sflag, size = 0x4, scoped, tag = 'scoped memory for tpu_custom_call.1']
    #allocation16 [shape = 'u8[65536]{0}', space=vmem, size = 0x10000, scoped, tag = 'input window, operand 10, single buffered']
    #allocation17 [shape = 'u8[65536]{0}', space=vmem, size = 0x10000, scoped, tag = 'input window, operand 11, single buffered']
    #allocation18 [shape = 's32[1]{0}', space=sflag, size = 0x4, scoped, tag = 'scoped memory for tpu_custom_call.1']
    #allocation19 [shape = 'u8[4096]{0}', space=vmem, size = 0x1000, scoped, tag = 'output window, operand 0, single buffered']
    %18 = vsyncpa [#allocation3], 0
    %19 = vsyncpa [#allocation6], 0
    %20 = vsyncpa [#allocation9], 0
    %21 = vsyncpa [#allocation12], 0
    %22 = vsyncpa [#allocation15], 0
    %23 = vsyncpa [#allocation18], 0
    %24 = vsyncpa [#allocation4], 0
    // Predicated region
    $region2: #{tpu_custom_call.1} parent=1 // pred_check
      _
    $region3: #{tpu_custom_call.1} parent=1 // pred_check_branch
      %26 = sbr.rel (0) target = $region5
    $region4: #{tpu_custom_call.1} parent=1 // pred_region
      %28 = vsyncadd [#allocation3], 0
      %s30 = sshll.u32 %s0, 4
      %s31 = int_to_ptr.hbm [resolvable:$true] %s30
      %s32 = sshll.u32 [#allocation2], 4
      %s33 = int_to_ptr.vmem [resolvable:$true] %s32
      %35 = dma.hbm_to_vmem [thread:$0]  %s31, 128, %s33, [#allocation3]
    $region5: #{tpu_custom_call.1} parent=1 // pred_fallthru
      _
    // Predicated region
    $region6: #{tpu_custom_call.1} parent=1 // pred_check
      _
    $region7: #{tpu_custom_call.1} parent=1 // pred_check_branch
      %37 = sbr.rel (0) target = $region9
    $region8: #{tpu_custom_call.1} parent=1 // pred_region
      %39 = vsyncadd [#allocation6], 0
      %s40 = sshll.u32 %s1, 4
      %s41 = int_to_ptr.hbm [resolvable:$true] %s40
      %s42 = sshll.u32 [#allocation5], 4
      %s43 = int_to_ptr.vmem [resolvable:$true] %s42
      %48 = dma.hbm_to_vmem [thread:$0]  %s41, 2048, %s43, [#allocation6], 128, 128, 8
    $region9: #{tpu_custom_call.1} parent=1 // pred_fallthru
      _
    // Predicated region
    $region10: #{tpu_custom_call.1} parent=1 // pred_check
      _
    $region11: #{tpu_custom_call.1} parent=1 // pred_check_branch
      %50 = sbr.rel (0) target = $region13
    $region12: #{tpu_custom_call.1} parent=1 // pred_region
      %52 = vsyncadd [#allocation6], 0
      %s53 = sshll.u32 %s2, 4
      %s54 = int_to_ptr.hbm [resolvable:$true] %s53
      %s55 = sshll.u32 [#allocation7], 4
      %s56 = int_to_ptr.vmem [resolvable:$true] %s55
      %61 = dma.hbm_to_vmem [thread:$0]  %s54, 2048, %s56, [#allocation6], 128, 128, 8
    $region13: #{tpu_custom_call.1} parent=1 // pred_fallthru
      _
    // Predicated region
    $region14: #{tpu_custom_call.1} parent=1 // pred_check
      _
    $region15: #{tpu_custom_call.1} parent=1 // pred_check_branch
      %63 = sbr.rel (0) target = $region17
    $region16: #{tpu_custom_call.1} parent=1 // pred_region
      %65 = vsyncadd [#allocation9], 0
      %s66 = sshll.u32 %s3, 4
      %s67 = int_to_ptr.hbm [resolvable:$true] %s66
      %s68 = sshll.u32 [#allocation8], 4
      %s69 = int_to_ptr.vmem [resolvable:$true] %s68
      %74 = dma.hbm_to_vmem [thread:$0]  %s67, 2048, %s69, [#allocation9], 128, 128, 8
    $region17: #{tpu_custom_call.1} parent=1 // pred_fallthru
      _
    // Predicated region
    $region18: #{tpu_custom_call.1} parent=1 // pred_check
      _
    $region19: #{tpu_custom_call.1} parent=1 // pred_check_branch
      %76 = sbr.rel (0) target = $region21
    $region20: #{tpu_custom_call.1} parent=1 // pred_region
      _
    $region21: #{tpu_custom_call.1} parent=1 // pred_fallthru
      _
    // Predicated region
    $region22: #{tpu_custom_call.1} parent=1 // pred_check
      _
    $region23: #{tpu_custom_call.1} parent=1 // pred_check_branch
      %78 = sbr.rel (0) target = $region25
    $region24: #{tpu_custom_call.1} parent=1 // pred_region
      %80 = vsyncadd [#allocation9], 0
      %s81 = sshll.u32 %s5, 4
      %s82 = int_to_ptr.hbm [resolvable:$true] %s81
      %s83 = sshll.u32 [#allocation10], 4
      %s84 = int_to_ptr.vmem [resolvable:$true] %s83
      %89 = dma.hbm_to_vmem [thread:$0]  %s82, 2048, %s84, [#allocation9], 128, 128, 8
    $region25: #{tpu_custom_call.1} parent=1 // pred_fallthru
      _
    // Predicated region
    $region26: #{tpu_custom_call.1} parent=1 // pred_check
      _
    $region27: #{tpu_custom_call.1} parent=1 // pred_check_branch
      %91 = sbr.rel (0) target = $region29
    $region28: #{tpu_custom_call.1} parent=1 // pred_region
      %93 = vsyncadd [#allocation12], 0
      %s94 = sshll.u32 %s6, 4
      %s95 = int_to_ptr.hbm [resolvable:$true] %s94
      %s96 = sshll.u32 [#allocation11], 4
      %s97 = int_to_ptr.vmem [resolvable:$true] %s96
      %102 = dma.hbm_to_vmem [thread:$0]  %s95, 2048, %s97, [#allocation12], 128, 128, 8
    $region29: #{tpu_custom_call.1} parent=1 // pred_fallthru
      _
    // Predicated region
    $region30: #{tpu_custom_call.1} parent=1 // pred_check
      _
    $region31: #{tpu_custom_call.1} parent=1 // pred_check_branch
      %104 = sbr.rel (0) target = $region33
    $region32: #{tpu_custom_call.1} parent=1 // pred_region
      %106 = vsyncadd [#allocation12], 0
      %s107 = sshll.u32 %s7, 4
      %s108 = int_to_ptr.hbm [resolvable:$true] %s107
      %s109 = sshll.u32 [#allocation13], 4
      %s110 = int_to_ptr.vmem [resolvable:$true] %s109
      %115 = dma.hbm_to_vmem [thread:$0]  %s108, 2048, %s110, [#allocation12], 128, 128, 8
    $region33: #{tpu_custom_call.1} parent=1 // pred_fallthru
      _
    // Predicated region
    $region34: #{tpu_custom_call.1} parent=1 // pred_check
      _
    $region35: #{tpu_custom_call.1} parent=1 // pred_check_branch
      %117 = sbr.rel (0) target = $region37
    $region36: #{tpu_custom_call.1} parent=1 // pred_region
      _
    $region37: #{tpu_custom_call.1} parent=1 // pred_fallthru
      _
    // Predicated region
    $region38: #{tpu_custom_call.1} parent=1 // pred_check
      _
    $region39: #{tpu_custom_call.1} parent=1 // pred_check_branch
      %119 = sbr.rel (0) target = $region41
    $region40: #{tpu_custom_call.1} parent=1 // pred_region
      %121 = vsyncadd [#allocation15], 0
      %s122 = sshll.u32 %s9, 4
      %s123 = int_to_ptr.hbm [resolvable:$true] %s122
      %s124 = sshll.u32 [#allocation14], 4
      %s125 = int_to_ptr.vmem [resolvable:$true] %s124
      %130 = dma.hbm_to_vmem [thread:$0]  %s123, 2048, %s125, [#allocation15], 128, 128, 8
    $region41: #{tpu_custom_call.1} parent=1 // pred_fallthru
      _
    // Predicated region
    $region42: #{tpu_custom_call.1} parent=1 // pred_check
      _
    $region43: #{tpu_custom_call.1} parent=1 // pred_check_branch
      %132 = sbr.rel (0) target = $region45
    $region44: #{tpu_custom_call.1} parent=1 // pred_region
      %134 = vsyncadd [#allocation15], 0
      %s135 = sshll.u32 %s10, 4
      %s136 = int_to_ptr.hbm [resolvable:$true] %s135
      %s137 = sshll.u32 [#allocation16], 4
      %s138 = int_to_ptr.vmem [resolvable:$true] %s137
      %143 = dma.hbm_to_vmem [thread:$0]  %s136, 2048, %s138, [#allocation15], 128, 128, 8
    $region45: #{tpu_custom_call.1} parent=1 // pred_fallthru
      _
    // Predicated region
    $region46: #{tpu_custom_call.1} parent=1 // pred_check
      _
    $region47: #{tpu_custom_call.1} parent=1 // pred_check_branch
      %145 = sbr.rel (0) target = $region49
    $region48: #{tpu_custom_call.1} parent=1 // pred_region
      %147 = vsyncadd [#allocation18], 0
      %s148 = sshll.u32 %s11, 4
      %s149 = int_to_ptr.hbm [resolvable:$true] %s148
      %s150 = sshll.u32 [#allocation17], 4
      %s151 = int_to_ptr.vmem [resolvable:$true] %s150
      %156 = dma.hbm_to_vmem [thread:$0]  %s149, 2048, %s151, [#allocation18], 128, 128, 8
    $region49: #{tpu_custom_call.1} parent=1 // pred_fallthru
      _
    // Predicated region
    $region50: #{tpu_custom_call.1} parent=1 // pred_check
      _
    $region51: #{tpu_custom_call.1} parent=1 // pred_check_branch
      %158 = sbr.rel (0) target = $region53
    $region52: #{tpu_custom_call.1} parent=1 // pred_region
      _
    $region53: #{tpu_custom_call.1} parent=1 // pred_fallthru
      _
    // Predicated region
    $region54: #{tpu_custom_call.1} parent=1 // pred_check
      _
    $region55: #{tpu_custom_call.1} parent=1 // pred_check_branch
      %160 = sbr.rel (0) target = $region57
    $region56: #{tpu_custom_call.1} parent=1 // pred_region
      %162 = dma.done [#allocation3], 128
    $region57: #{tpu_custom_call.1} parent=1 // pred_fallthru
      _
    // Predicated region
    $region58: #{tpu_custom_call.1} parent=1 // pred_check
      _
    $region59: #{tpu_custom_call.1} parent=1 // pred_check_branch
      %164 = sbr.rel (0) target = $region61
    $region60: #{tpu_custom_call.1} parent=1 // pred_region
      %166 = dma.done [#allocation6], 2048
    $region61: #{tpu_custom_call.1} parent=1 // pred_fallthru
      _
    // Predicated region
    $region62: #{tpu_custom_call.1} parent=1 // pred_check
      _
    $region63: #{tpu_custom_call.1} parent=1 // pred_check_branch
      %168 = sbr.rel (0) target = $region65
    $region64: #{tpu_custom_call.1} parent=1 // pred_region
      %170 = dma.done [#allocation6], 2048
    $region65: #{tpu_custom_call.1} parent=1 // pred_fallthru
      _
    // Predicated region
    $region66: #{tpu_custom_call.1} parent=1 // pred_check
      _
    $region67: #{tpu_custom_call.1} parent=1 // pred_check_branch
      %172 = sbr.rel (0) target = $region69
    $region68: #{tpu_custom_call.1} parent=1 // pred_region
      %174 = dma.done [#allocation9], 2048
    $region69: #{tpu_custom_call.1} parent=1 // pred_fallthru
      _
    // Predicated region
    $region70: #{tpu_custom_call.1} parent=1 // pred_check
      _
    $region71: #{tpu_custom_call.1} parent=1 // pred_check_branch
      %176 = sbr.rel (0) target = $region73
    $region72: #{tpu_custom_call.1} parent=1 // pred_region
      %178 = dma.done [#allocation9], 2048
    $region73: #{tpu_custom_call.1} parent=1 // pred_fallthru
      _
    // Predicated region
    $region74: #{tpu_custom_call.1} parent=1 // pred_check
      _
    $region75: #{tpu_custom_call.1} parent=1 // pred_check_branch
      %180 = sbr.rel (0) target = $region77
    $region76: #{tpu_custom_call.1} parent=1 // pred_region
      %182 = dma.done [#allocation12], 2048
    $region77: #{tpu_custom_call.1} parent=1 // pred_fallthru
      _
    // Predicated region
    $region78: #{tpu_custom_call.1} parent=1 // pred_check
      _
    $region79: #{tpu_custom_call.1} parent=1 // pred_check_branch
      %184 = sbr.rel (0) target = $region81
    $region80: #{tpu_custom_call.1} parent=1 // pred_region
      %186 = dma.done [#allocation12], 2048
    $region81: #{tpu_custom_call.1} parent=1 // pred_fallthru
      _
    // Predicated region
    $region82: #{tpu_custom_call.1} parent=1 // pred_check
      _
    $region83: #{tpu_custom_call.1} parent=1 // pred_check_branch
      %188 = sbr.rel (0) target = $region85
    $region84: #{tpu_custom_call.1} parent=1 // pred_region
      %190 = dma.done [#allocation15], 2048
    $region85: #{tpu_custom_call.1} parent=1 // pred_fallthru
      _
    // Predicated region
    $region86: #{tpu_custom_call.1} parent=1 // pred_check
      _
    $region87: #{tpu_custom_call.1} parent=1 // pred_check_branch
      %192 = sbr.rel (0) target = $region89
    $region88: #{tpu_custom_call.1} parent=1 // pred_region
      %194 = dma.done [#allocation15], 2048
    $region89: #{tpu_custom_call.1} parent=1 // pred_fallthru
      _
    // Predicated region
    $region90: #{tpu_custom_call.1} parent=1 // pred_check
      _
    $region91: #{tpu_custom_call.1} parent=1 // pred_check_branch
      %196 = sbr.rel (0) target = $region93
    $region92: #{tpu_custom_call.1} parent=1 // pred_region
      %198 = dma.done [#allocation18], 2048
    $region93: #{tpu_custom_call.1} parent=1 // pred_fallthru
      _
    %v199 = vld [vmem:[#allocation2] sm:$0xff]
    %v200 = vld [vmem:[#allocation5] sm:$0xff]
    %v201 = vld [vmem:[#allocation5 + $0x8] sm:$0xff]
    %v202 = vld [vmem:[#allocation5 + $0x10] sm:$0xff]
    %v203 = vld [vmem:[#allocation5 + $0x18] sm:$0xff]
    %v204 = vld [vmem:[#allocation5 + $0x20] sm:$0xff]
    %v205 = vld [vmem:[#allocation5 + $0x28] sm:$0xff]
    %v206 = vld [vmem:[#allocation5 + $0x30] sm:$0xff]
    %v207 = vld [vmem:[#allocation5 + $0x38] sm:$0xff]
    %v208 = vld [vmem:[#allocation5 + $0x40] sm:$0xff]
    %v209 = vld [vmem:[#allocation5 + $0x48] sm:$0xff]
    %v210 = vld [vmem:[#allocation5 + $0x50] sm:$0xff]
    %v211 = vld [vmem:[#allocation5 + $0x58] sm:$0xff]
    %v212 = vld [vmem:[#allocation5 + $0x60] sm:$0xff]
    %v213 = vld [vmem:[#allocation5 + $0x68] sm:$0xff]
    %v214 = vld [vmem:[#allocation5 + $0x70] sm:$0xff]
    %v215 = vld [vmem:[#allocation5 + $0x78] sm:$0xff]
    %v216 = vld [vmem:[#allocation7] sm:$0xff]
    %v217 = vld [vmem:[#allocation7 + $0x8] sm:$0xff]
    %v218 = vld [vmem:[#allocation7 + $0x10] sm:$0xff]
    %v219 = vld [vmem:[#allocation7 + $0x18] sm:$0xff]
    %v220 = vld [vmem:[#allocation7 + $0x20] sm:$0xff]
    %v221 = vld [vmem:[#allocation7 + $0x28] sm:$0xff]
    %v222 = vld [vmem:[#allocation7 + $0x30] sm:$0xff]
    %v223 = vld [vmem:[#allocation7 + $0x38] sm:$0xff]
    %v224 = vld [vmem:[#allocation7 + $0x40] sm:$0xff]
    %v225 = vld [vmem:[#allocation7 + $0x48] sm:$0xff]
    %v226 = vld [vmem:[#allocation7 + $0x50] sm:$0xff]
    %v227 = vld [vmem:[#allocation7 + $0x58] sm:$0xff]
    %v228 = vld [vmem:[#allocation7 + $0x60] sm:$0xff]
    %v229 = vld [vmem:[#allocation7 + $0x68] sm:$0xff]
    %v230 = vld [vmem:[#allocation7 + $0x70] sm:$0xff]
    %v231 = vld [vmem:[#allocation7 + $0x78] sm:$0xff]
    %v232 = vld [vmem:[#allocation8] sm:$0xff]
    %v233 = vld [vmem:[#allocation8 + $0x8] sm:$0xff]
    %v234 = vld [vmem:[#allocation8 + $0x10] sm:$0xff]
    %v235 = vld [vmem:[#allocation8 + $0x18] sm:$0xff]
    %v236 = vld [vmem:[#allocation8 + $0x20] sm:$0xff]
    %v237 = vld [vmem:[#allocation8 + $0x28] sm:$0xff]
    %v238 = vld [vmem:[#allocation8 + $0x30] sm:$0xff]
    %v239 = vld [vmem:[#allocation8 + $0x38] sm:$0xff]
    %v240 = vld [vmem:[#allocation8 + $0x40] sm:$0xff]
    %v241 = vld [vmem:[#allocation8 + $0x48] sm:$0xff]
    %v242 = vld [vmem:[#allocation8 + $0x50] sm:$0xff]
    %v243 = vld [vmem:[#allocation8 + $0x58] sm:$0xff]
    %v244 = vld [vmem:[#allocation8 + $0x60] sm:$0xff]
    %v245 = vld [vmem:[#allocation8 + $0x68] sm:$0xff]
    %v246 = vld [vmem:[#allocation8 + $0x70] sm:$0xff]
    %v247 = vld [vmem:[#allocation8 + $0x78] sm:$0xff]
    %v248 = vmul.f32 %v216, %v232
    %v249 = vmul.f32 %v217, %v233
    %v250 = vmul.f32 %v218, %v234
    %v251 = vmul.f32 %v219, %v235
    %v252 = vmul.f32 %v220, %v236
    %v253 = vmul.f32 %v221, %v237
    %v254 = vmul.f32 %v222, %v238
    %v255 = vmul.f32 %v223, %v239
    %v256 = vmul.f32 %v224, %v240
    %v257 = vmul.f32 %v225, %v241
    %v258 = vmul.f32 %v226, %v242
    %v259 = vmul.f32 %v227, %v243
    %v260 = vmul.f32 %v228, %v244
    %v261 = vmul.f32 %v229, %v245
    %v262 = vmul.f32 %v230, %v246
    %v263 = vmul.f32 %v231, %v247
    %v264 = vadd.f32 %v200, %v248
    %v265 = vadd.f32 %v201, %v249
    %v266 = vadd.f32 %v202, %v250
    %v267 = vadd.f32 %v203, %v251
    %v268 = vadd.f32 %v204, %v252
    %v269 = vadd.f32 %v205, %v253
    %v270 = vadd.f32 %v206, %v254
    %v271 = vadd.f32 %v207, %v255
    %v272 = vadd.f32 %v208, %v256
    %v273 = vadd.f32 %v209, %v257
    %v274 = vadd.f32 %v210, %v258
    %v275 = vadd.f32 %v211, %v259
    %v276 = vadd.f32 %v212, %v260
    %v277 = vadd.f32 %v213, %v261
    %v278 = vadd.f32 %v214, %v262
    %v279 = vadd.f32 %v215, %v263
    %v280 = vld [vmem:[%s4] sm:$0x1]
    %v282 = vperm.slane %v280, 0
    %284 = vmatpush.msra.mxu0 %v279
    %285 = vmatpush.msra.mxu0 %v278
    %286 = vmatpush.msra.mxu0 %v277
    %287 = vmatpush.msra.mxu0 %v276
    %288 = vmatpush.msra.mxu0 %v275
    %289 = vmatpush.msra.mxu0 %v274
    %290 = vmatpush.msra.mxu0 %v273
    %291 = vmatpush.msra.mxu0 %v272
    %292 = vmatpush.msra.mxu0 %v271
    %293 = vmatpush.msra.mxu0 %v270
    %294 = vmatpush.msra.mxu0 %v269
    %295 = vmatpush.msra.mxu0 %v268
    %296 = vmatpush.msra.mxu0 %v267
    %297 = vmatpush.msra.mxu0 %v266
    %298 = vmatpush.msra.mxu0 %v265
    %299 = vmatpush.msra.mxu0 %v264
    %300 = vmatmul.f32.gmra.mxu0 %v199
    %v301 = vpop.f32.mrf.mxu0
    %v302 = vadd.f32 %v282, %v301
    %303 = vdwg.mxu0
    %v304 = vmax.f32 %v302, 0.0
    %v305 = vld [vmem:[#allocation10] sm:$0xff]
    %v306 = vld [vmem:[#allocation10 + $0x8] sm:$0xff]
    %v307 = vld [vmem:[#allocation10 + $0x10] sm:$0xff]
    %v308 = vld [vmem:[#allocation10 + $0x18] sm:$0xff]
    %v309 = vld [vmem:[#allocation10 + $0x20] sm:$0xff]
    %v310 = vld [vmem:[#allocation10 + $0x28] sm:$0xff]
    %v311 = vld [vmem:[#allocation10 + $0x30] sm:$0xff]
    %v312 = vld [vmem:[#allocation10 + $0x38] sm:$0xff]
    %v313 = vld [vmem:[#allocation10 + $0x40] sm:$0xff]
    %v314 = vld [vmem:[#allocation10 + $0x48] sm:$0xff]
    %v315 = vld [vmem:[#allocation10 + $0x50] sm:$0xff]
    %v316 = vld [vmem:[#allocation10 + $0x58] sm:$0xff]
    %v317 = vld [vmem:[#allocation10 + $0x60] sm:$0xff]
    %v318 = vld [vmem:[#allocation10 + $0x68] sm:$0xff]
    %v319 = vld [vmem:[#allocation10 + $0x70] sm:$0xff]
    %v320 = vld [vmem:[#allocation10 + $0x78] sm:$0xff]
    %v321 = vld [vmem:[#allocation11] sm:$0xff]
    %v322 = vld [vmem:[#allocation11 + $0x8] sm:$0xff]
    %v323 = vld [vmem:[#allocation11 + $0x10] sm:$0xff]
    %v324 = vld [vmem:[#allocation11 + $0x18] sm:$0xff]
    %v325 = vld [vmem:[#allocation11 + $0x20] sm:$0xff]
    %v326 = vld [vmem:[#allocation11 + $0x28] sm:$0xff]
    %v327 = vld [vmem:[#allocation11 + $0x30] sm:$0xff]
    %v328 = vld [vmem:[#allocation11 + $0x38] sm:$0xff]
    %v329 = vld [vmem:[#allocation11 + $0x40] sm:$0xff]
    %v330 = vld [vmem:[#allocation11 + $0x48] sm:$0xff]
    %v331 = vld [vmem:[#allocation11 + $0x50] sm:$0xff]
    %v332 = vld [vmem:[#allocation11 + $0x58] sm:$0xff]
    %v333 = vld [vmem:[#allocation11 + $0x60] sm:$0xff]
    %v334 = vld [vmem:[#allocation11 + $0x68] sm:$0xff]
    %v335 = vld [vmem:[#allocation11 + $0x70] sm:$0xff]
    %v336 = vld [vmem:[#allocation11 + $0x78] sm:$0xff]
    %v337 = vld [vmem:[#allocation13] sm:$0xff]
    %v338 = vld [vmem:[#allocation13 + $0x8] sm:$0xff]
    %v339 = vld [vmem:[#allocation13 + $0x10] sm:$0xff]
    %v340 = vld [vmem:[#allocation13 + $0x18] sm:$0xff]
    %v341 = vld [vmem:[#allocation13 + $0x20] sm:$0xff]
    %v342 = vld [vmem:[#allocation13 + $0x28] sm:$0xff]
    %v343 = vld [vmem:[#allocation13 + $0x30] sm:$0xff]
    %v344 = vld [vmem:[#allocation13 + $0x38] sm:$0xff]
    %v345 = vld [vmem:[#allocation13 + $0x40] sm:$0xff]
    %v346 = vld [vmem:[#allocation13 + $0x48] sm:$0xff]
    %v347 = vld [vmem:[#allocation13 + $0x50] sm:$0xff]
    %v348 = vld [vmem:[#allocation13 + $0x58] sm:$0xff]
    %v349 = vld [vmem:[#allocation13 + $0x60] sm:$0xff]
    %v350 = vld [vmem:[#allocation13 + $0x68] sm:$0xff]
    %v351 = vld [vmem:[#allocation13 + $0x70] sm:$0xff]
    %v352 = vld [vmem:[#allocation13 + $0x78] sm:$0xff]
    %v353 = vmul.f32 %v321, %v337
    %v354 = vmul.f32 %v322, %v338
    %v355 = vmul.f32 %v323, %v339
    %v356 = vmul.f32 %v324, %v340
    %v357 = vmul.f32 %v325, %v341
    %v358 = vmul.f32 %v326, %v342
    %v359 = vmul.f32 %v327, %v343
    %v360 = vmul.f32 %v328, %v344
    %v361 = vmul.f32 %v329, %v345
    %v362 = vmul.f32 %v330, %v346
    %v363 = vmul.f32 %v331, %v347
    %v364 = vmul.f32 %v332, %v348
    %v365 = vmul.f32 %v333, %v349
    %v366 = vmul.f32 %v334, %v350
    %v367 = vmul.f32 %v335, %v351
    %v368 = vmul.f32 %v336, %v352
    %v369 = vadd.f32 %v305, %v353
    %v370 = vadd.f32 %v306, %v354
    %v371 = vadd.f32 %v307, %v355
    %v372 = vadd.f32 %v308, %v356
    %v373 = vadd.f32 %v309, %v357
    %v374 = vadd.f32 %v310, %v358
    %v375 = vadd.f32 %v311, %v359
    %v376 = vadd.f32 %v312, %v360
    %v377 = vadd.f32 %v313, %v361
    %v378 = vadd.f32 %v314, %v362
    %v379 = vadd.f32 %v315, %v363
    %v380 = vadd.f32 %v316, %v364
    %v381 = vadd.f32 %v317, %v365
    %v382 = vadd.f32 %v318, %v366
    %v383 = vadd.f32 %v319, %v367
    %v384 = vadd.f32 %v320, %v368
    %v385 = vld [vmem:[%s8] sm:$0x1]
    %v387 = vperm.slane %v385, 0
    %389 = vmatpush.msra.mxu0 %v384
    %390 = vmatpush.msra.mxu0 %v383
    %391 = vmatpush.msra.mxu0 %v382
    %392 = vmatpush.msra.mxu0 %v381
    %393 = vmatpush.msra.mxu0 %v380
    %394 = vmatpush.msra.mxu0 %v379
    %395 = vmatpush.msra.mxu0 %v378
    %396 = vmatpush.msra.mxu0 %v377
    %397 = vmatpush.msra.mxu0 %v376
    %398 = vmatpush.msra.mxu0 %v375
    %399 = vmatpush.msra.mxu0 %v374
    %400 = vmatpush.msra.mxu0 %v373
    %401 = vmatpush.msra.mxu0 %v372
    %402 = vmatpush.msra.mxu0 %v371
    %403 = vmatpush.msra.mxu0 %v370
    %404 = vmatpush.msra.mxu0 %v369
    %405 = vmatmul.f32.gmra.mxu0 %v304
    %v406 = vpop.f32.mrf.mxu0
    %v407 = vadd.f32 %v387, %v406
    %408 = vdwg.mxu0
    %v409 = vmax.f32 %v407, 0.0
    %v410 = vld [vmem:[#allocation14] sm:$0xff]
    %v411 = vld [vmem:[#allocation14 + $0x8] sm:$0xff]
    %v412 = vld [vmem:[#allocation14 + $0x10] sm:$0xff]
    %v413 = vld [vmem:[#allocation14 + $0x18] sm:$0xff]
    %v414 = vld [vmem:[#allocation14 + $0x20] sm:$0xff]
    %v415 = vld [vmem:[#allocation14 + $0x28] sm:$0xff]
    %v416 = vld [vmem:[#allocation14 + $0x30] sm:$0xff]
    %v417 = vld [vmem:[#allocation14 + $0x38] sm:$0xff]
    %v418 = vld [vmem:[#allocation14 + $0x40] sm:$0xff]
    %v419 = vld [vmem:[#allocation14 + $0x48] sm:$0xff]
    %v420 = vld [vmem:[#allocation14 + $0x50] sm:$0xff]
    %v421 = vld [vmem:[#allocation14 + $0x58] sm:$0xff]
    %v422 = vld [vmem:[#allocation14 + $0x60] sm:$0xff]
    %v423 = vld [vmem:[#allocation14 + $0x68] sm:$0xff]
    %v424 = vld [vmem:[#allocation14 + $0x70] sm:$0xff]
    %v425 = vld [vmem:[#allocation14 + $0x78] sm:$0xff]
    %v426 = vld [vmem:[#allocation16] sm:$0xff]
    %v427 = vld [vmem:[#allocation16 + $0x8] sm:$0xff]
    %v428 = vld [vmem:[#allocation16 + $0x10] sm:$0xff]
    %v429 = vld [vmem:[#allocation16 + $0x18] sm:$0xff]
    %v430 = vld [vmem:[#allocation16 + $0x20] sm:$0xff]
    %v431 = vld [vmem:[#allocation16 + $0x28] sm:$0xff]
    %v432 = vld [vmem:[#allocation16 + $0x30] sm:$0xff]
    %v433 = vld [vmem:[#allocation16 + $0x38] sm:$0xff]
    %v434 = vld [vmem:[#allocation16 + $0x40] sm:$0xff]
    %v435 = vld [vmem:[#allocation16 + $0x48] sm:$0xff]
    %v436 = vld [vmem:[#allocation16 + $0x50] sm:$0xff]
    %v437 = vld [vmem:[#allocation16 + $0x58] sm:$0xff]
    %v438 = vld [vmem:[#allocation16 + $0x60] sm:$0xff]
    %v439 = vld [vmem:[#allocation16 + $0x68] sm:$0xff]
    %v440 = vld [vmem:[#allocation16 + $0x70] sm:$0xff]
    %v441 = vld [vmem:[#allocation16 + $0x78] sm:$0xff]
    %v442 = vld [vmem:[#allocation17] sm:$0xff]
    %v443 = vld [vmem:[#allocation17 + $0x8] sm:$0xff]
    %v444 = vld [vmem:[#allocation17 + $0x10] sm:$0xff]
    %v445 = vld [vmem:[#allocation17 + $0x18] sm:$0xff]
    %v446 = vld [vmem:[#allocation17 + $0x20] sm:$0xff]
    %v447 = vld [vmem:[#allocation17 + $0x28] sm:$0xff]
    %v448 = vld [vmem:[#allocation17 + $0x30] sm:$0xff]
    %v449 = vld [vmem:[#allocation17 + $0x38] sm:$0xff]
    %v450 = vld [vmem:[#allocation17 + $0x40] sm:$0xff]
    %v451 = vld [vmem:[#allocation17 + $0x48] sm:$0xff]
    %v452 = vld [vmem:[#allocation17 + $0x50] sm:$0xff]
    %v453 = vld [vmem:[#allocation17 + $0x58] sm:$0xff]
    %v454 = vld [vmem:[#allocation17 + $0x60] sm:$0xff]
    %v455 = vld [vmem:[#allocation17 + $0x68] sm:$0xff]
    %v456 = vld [vmem:[#allocation17 + $0x70] sm:$0xff]
    %v457 = vld [vmem:[#allocation17 + $0x78] sm:$0xff]
    %v458 = vmul.f32 %v426, %v442
    %v459 = vmul.f32 %v427, %v443
    %v460 = vmul.f32 %v428, %v444
    %v461 = vmul.f32 %v429, %v445
    %v462 = vmul.f32 %v430, %v446
    %v463 = vmul.f32 %v431, %v447
    %v464 = vmul.f32 %v432, %v448
    %v465 = vmul.f32 %v433, %v449
    %v466 = vmul.f32 %v434, %v450
    %v467 = vmul.f32 %v435, %v451
    %v468 = vmul.f32 %v436, %v452
    %v469 = vmul.f32 %v437, %v453
    %v470 = vmul.f32 %v438, %v454
    %v471 = vmul.f32 %v439, %v455
    %v472 = vmul.f32 %v440, %v456
    %v473 = vmul.f32 %v441, %v457
    %v474 = vadd.f32 %v410, %v458
    %v475 = vadd.f32 %v411, %v459
    %v476 = vadd.f32 %v412, %v460
    %v477 = vadd.f32 %v413, %v461
    %v478 = vadd.f32 %v414, %v462
    %v479 = vadd.f32 %v415, %v463
    %v480 = vadd.f32 %v416, %v464
    %v481 = vadd.f32 %v417, %v465
    %v482 = vadd.f32 %v418, %v466
    %v483 = vadd.f32 %v419, %v467
    %v484 = vadd.f32 %v420, %v468
    %v485 = vadd.f32 %v421, %v469
    %v486 = vadd.f32 %v422, %v470
    %v487 = vadd.f32 %v423, %v471
    %v488 = vadd.f32 %v424, %v472
    %v489 = vadd.f32 %v425, %v473
    %v490 = vld [vmem:[%s12] sm:$0x1]
    %v492 = vperm.slane %v490, 0
    %494 = vmatpush.msra.mxu0 %v489
    %495 = vmatpush.msra.mxu0 %v488
    %496 = vmatpush.msra.mxu0 %v487
    %497 = vmatpush.msra.mxu0 %v486
    %498 = vmatpush.msra.mxu0 %v485
    %499 = vmatpush.msra.mxu0 %v484
    %500 = vmatpush.msra.mxu0 %v483
    %501 = vmatpush.msra.mxu0 %v482
    %502 = vmatpush.msra.mxu0 %v481
    %503 = vmatpush.msra.mxu0 %v480
    %504 = vmatpush.msra.mxu0 %v479
    %505 = vmatpush.msra.mxu0 %v478
    %506 = vmatpush.msra.mxu0 %v477
    %507 = vmatpush.msra.mxu0 %v476
    %508 = vmatpush.msra.mxu0 %v475
    %509 = vmatpush.msra.mxu0 %v474
    %510 = vmatmul.f32.gmra.mxu0 %v409
    %v511 = vpop.f32.mrf.mxu0
    %v512 = vadd.f32 %v492, %v511
    %513 = vdwg.mxu0
    %514 = vst [vmem:[#allocation19] sm:$0xff] %v512
    // Predicated region
    $region94: #{tpu_custom_call.1} parent=1 // pred_check
      _
    $region95: #{tpu_custom_call.1} parent=1 // pred_check_branch
      %516 = sbr.rel (0) target = $region97
    $region96: #{tpu_custom_call.1} parent=1 // pred_region
      %518 = vsyncadd [#allocation4], 0
      %s520 = sshll.u32 [#allocation19], 4
      %s521 = int_to_ptr.vmem [resolvable:$true] %s520
      %s522 = sshll.u32 %s13, 4
      %s523 = int_to_ptr.hbm [resolvable:$true] %s522
      %525 = dma.vmem_to_hbm [thread:$0]  %s521, 128, %s523, [#allocation4]
    $region97: #{tpu_custom_call.1} parent=1 // pred_fallthru
      _
    // Predicated region
    $region98: #{tpu_custom_call.1} parent=1 // pred_check
      _
    $region99: #{tpu_custom_call.1} parent=1 // pred_check_branch
      %527 = sbr.rel (0) target = $region101
    $region100: #{tpu_custom_call.1} parent=1 // pred_region
      %529 = dma.done [#allocation4], 128
    $region101: #{tpu_custom_call.1} parent=1 // pred_fallthru
      _
    %530 = vsyncpa [#allocation3], 1
    %531 = vsyncpa [#allocation6], 1
    %532 = vsyncpa [#allocation9], 1
    %533 = vsyncpa [#allocation12], 1
    %534 = vsyncpa [#allocation15], 1
    %535 = vsyncpa [#allocation18], 1
    %536 = vsyncpa [#allocation4], 1

</llo_original>
